<compile_context>
chip_gen: v7x
topology: tpu7x:2x2x1
jax: 0.10.0
libtpu: 0.0.40
codegen_flags: <defaults>
</compile_context>

<pallas_src>
import functools

import jax
import jax.numpy as jnp
from jax.experimental import pallas as pl
from jax.experimental.pallas import tpu as pltpu

LANE = 128


def _round_up(v, m):
    return ((v + m - 1) // m) * m


def _cdiv(a, b):
    return -(-a // b)


def _vmem_capacity_bytes():
    try:
        return int(pltpu.get_tpu_info().vmem_capacity_bytes)
    except Exception:
        return 64 << 20          # conservative (v7x-safe) fallback


# ----------------------------- mode-mix kernel ------------------------------ #

def _mode_mix_kernel(x_ref, w_ref, o_ref):
    # x_ref: (gm, B, P)   P = G*2ck, lanes = G modes x [Re | Im]
    # w_ref: (gm, P, P)   block-diagonal: per mode [[Wr, Wi], [-Wi, Wr]]
    # o_ref: (gm, B, P)   same lane layout as x, f32
    o_ref[...] = jnp.einsum(
        'gbi,gio->gbo', x_ref[...], w_ref[...],
        preferred_element_type=jnp.float32).astype(o_ref.dtype)


def _mode_mix(x_pack, w_pack):
    n_groups, B, P = x_pack.shape
    itemsize = jnp.dtype(x_pack.dtype).itemsize

    vmem_cap = _vmem_capacity_bytes()
    small_vmem = vmem_cap <= (64 << 20)          # v7x-like: 64 MiB / TC, 2 TCs

    budget = (40 << 20) if small_vmem else (96 << 20)
    # double-buffered operand blocks + f32 output block, per group
    per_group = 2 * (itemsize * (P * P + B * P) + 4 * B * P)
    gm = max(1, min(n_groups, budget // max(per_group, 1)))
    if small_vmem and gm >= n_groups and n_groups >= 2:
        gm = _cdiv(n_groups, 2)   # keep 2 steps so v7x's 2 TCs can share the axis

    grid = (_cdiv(n_groups, gm),)

    flops = 2 * n_groups * B * P * P
    bytes_accessed = (x_pack.size + w_pack.size) * itemsize + n_groups * B * P * 4
    cost = pl.CostEstimate(flops=flops, transcendentals=0,
                           bytes_accessed=bytes_accessed)

    block_bytes = gm * (itemsize * (P * P + B * P) + 4 * B * P)
    cap = (56 << 20) if small_vmem else (110 << 20)
    vmem_limit = int(min(max(2 * block_bytes + (4 << 20), 32 << 20), cap))

    return pl.pallas_call(
        _mode_mix_kernel,
        grid=grid,
        in_specs=[pl.BlockSpec((gm, B, P), lambda g: (g, 0, 0)),
                  pl.BlockSpec((gm, P, P), lambda g: (g, 0, 0))],
        out_specs=pl.BlockSpec((gm, B, P), lambda g: (g, 0, 0)),
        out_shape=jax.ShapeDtypeStruct((n_groups, B, P), jnp.float32),
        compiler_params=pltpu.CompilerParams(
            dimension_semantics=("parallel",),
            vmem_limit_bytes=vmem_limit),
        cost_estimate=cost,
    )(x_pack, w_pack)


# ------------------------------ normalization ------------------------------- #

def _stats_kernel(x_ref, sum_ref, sq_ref, *, n_valid, block_rows):
    # Serial accumulation across the grid ("arbitrary" axis); do NOT flip this
    # axis to "parallel" or the += races.
    @pl.when(pl.program_id(0) == 0)
    def _():
        sum_ref[...] = jnp.zeros_like(sum_ref)
        sq_ref[...] = jnp.zeros_like(sq_ref)

    row0 = pl.program_id(0) * block_rows
    ridx = jax.lax.broadcasted_iota(jnp.int32, x_ref.shape, 0) + row0
    cidx = jax.lax.broadcasted_iota(jnp.int32, x_ref.shape, 1)
    valid = (ridx * LANE + cidx) < n_valid
    x = jnp.where(valid, x_ref[...], 0.0)
    sum_ref[...] += jnp.sum(x)
    sq_ref[...] += jnp.sum(x * x)


def _apply_norm_kernel(stats_ref, x_ref, o_ref):
    # stats_ref (SMEM, shape (2,)): [mean, 1/std]
    mean = stats_ref[0]
    inv_std = stats_ref[1]
    o_ref[...] = (x_ref[...] - mean) * inv_std


def _normalize(x):
    """(x - mean(x)) / std(x) with torch's unbiased std, tiled in Pallas."""
    shape = x.shape
    flat = x.reshape(-1).astype(jnp.float32)
    n = flat.size

    rows = _cdiv(n, LANE)
    tail = rows * LANE - n
    if tail:                         # skipped entirely when numel % 128 == 0
        flat = jnp.pad(flat, (0, tail))
    x2d = flat.reshape(rows, LANE)

    # One full-height lane-dense block when it fits (block dims == array dims
    # bypass the (8,128) rule); otherwise 2048-row blocks with masked tail.
    block_rows = rows if rows <= 2048 else 2048
    grid_r = _cdiv(rows, block_rows)

    row_spec = pl.BlockSpec((block_rows, LANE), lambda i: (i, 0))
    acc_spec = pl.BlockSpec((1, 1), lambda i: (0, 0))

    s, sq = pl.pallas_call(
        functools.partial(_stats_kernel, n_valid=n, block_rows=block_rows),
        grid=(grid_r,),
        in_specs=[row_spec],
        out_specs=(acc_spec, acc_spec),
        out_shape=(jax.ShapeDtypeStruct((1, 1), jnp.float32),
                   jax.ShapeDtypeStruct((1, 1), jnp.float32)),
        compiler_params=pltpu.CompilerParams(
            dimension_semantics=("arbitrary",)),
    )(x2d)

    total = s[0, 0]
    mean = total / n
    # torch.std() default: unbiased (ddof=1); clamp against catastrophic
    # cancellation (E[x^2] - mean^2 form can go slightly negative).
    var = (sq[0, 0] - total * mean) / max(n - 1, 1)
    var = jnp.maximum(var, 0.0)
    inv_std = jax.lax.rsqrt(var)
    stats = jnp.stack([mean, inv_std]).astype(jnp.float32)   # (2,) -> SMEM

    out2d = pl.pallas_call(
        _apply_norm_kernel,
        grid=(grid_r,),
        in_specs=[pl.BlockSpec(memory_space=pltpu.MemorySpace.SMEM),
                  row_spec],
        out_specs=row_spec,
        out_shape=jax.ShapeDtypeStruct((rows, LANE), jnp.float32),
        compiler_params=pltpu.CompilerParams(
            dimension_semantics=("parallel",)),
    )(stats, x2d)

    out = out2d.reshape(-1)
    if tail:
        out = out[:n]
    return out.reshape(shape)


# ---------------------------- weight pre-packing ---------------------------- #

def pack_ft_weights(weights_r, weights_i, modes1, N, compute_dtype=jnp.float32):
    """Pack complex mode-mix weights into cached block-diagonal real tiles.

    G = 128 // (2ck) modes share one (P, P) tile (P = G*2ck); each mode's
    2x2 real/imag block [[Wr, Wi], [-Wi, Wr]] sits on the diagonal so one real
    MXU matmul does the complex einsum for G modes at once.  Call once per
    weight set and reuse across forward calls.
    """
    ck = weights_r.shape[0]
    F = N // 2 + 1
    l = min(modes1, F)
    ck2 = 2 * ck
    G = max(1, LANE // ck2)
    l_pad = _round_up(l, G)
    n_groups = l_pad // G
    P = G * ck2

    wr = weights_r[:, :, :l].transpose(2, 0, 1)              # (l, ck, ck)
    wi = weights_i[:, :, :l].transpose(2, 0, 1)
    w = jnp.concatenate([jnp.concatenate([wr, wi], axis=2),
                         jnp.concatenate([-wi, wr], axis=2)], axis=1)  # (l,2ck,2ck)
    w = jnp.pad(w, ((0, l_pad - l), (0, 0), (0, 0)))
    w_grp = w.reshape(n_groups, G, ck2, ck2)
    eye = jnp.eye(G, dtype=w.dtype)
    w_blk = jnp.einsum('ngij,gh->ngihj', w_grp, eye).reshape(n_groups, P, P)

    return dict(w=w_blk.astype(compute_dtype), l=l, l_pad=l_pad, G=G,
                ck=ck, ck2=ck2, P=P, n_groups=n_groups, F=F)


# -------------------------------- forward ----------------------------------- #

def sparse_kernel_ft1d(x, weights_r, weights_i, modes1,
                       compute_dtype=jnp.float32, packed=None):
    """sparseKernelFT1d.forward.

    x:           (B, N, c, k) float32
    weights_r/i: (c*k, c*k, modes1) float32 (real / imag of complex weights)
    packed:      optional result of pack_ft_weights (cached weight packing).
    compute_dtype: MXU operand dtype (jnp.bfloat16 halves DMA bytes and doubles
                   MXU rate on v6e/v7x; accumulation is always f32).
    """
    B, N, c, k = x.shape
    ck = c * k
    if packed is None:
        packed = pack_ft_weights(weights_r, weights_i, modes1, N, compute_dtype)
    l, l_pad, G = packed['l'], packed['l_pad'], packed['G']
    ck2, P, n_groups, F = packed['ck2'], packed['P'], packed['n_groups'], packed['F']

    # TODO(synk): rfft/irfft have no Pallas primitive; they stay in XLA.
    xv = x.reshape(B, N, ck).transpose(0, 2, 1)               # (B, ck, N)
    x_fft = jnp.fft.rfft(xv, axis=-1)                         # (B, ck, F) c64

    xr = jnp.real(x_fft[:, :, :l])                            # (B, ck, l)
    xi = jnp.imag(x_fft[:, :, :l])
    xcat = jnp.concatenate([xr, xi], axis=1).transpose(2, 0, 1)   # (l, B, 2ck)
    xcat = jnp.pad(xcat, ((0, l_pad - l), (0, 0), (0, 0)))
    # Pack G modes along lanes to match the block-diagonal weight tiles.
    x_pack = (xcat.reshape(n_groups, G, B, ck2)
                  .transpose(0, 2, 1, 3)
                  .reshape(n_groups, B, P)).astype(compute_dtype)

    out = _mode_mix(x_pack, packed['w'])                      # (n_groups, B, P)

    out = (out.reshape(n_groups, B, G, ck2)
              .transpose(0, 2, 1, 3)
              .reshape(l_pad, B, ck2))[:l]                    # (l, B, 2ck)
    out_ft = (out[:, :, :ck] + 1j * out[:, :, ck:]).transpose(1, 2, 0)  # (B,ck,l)
    out_ft = jnp.pad(out_ft, ((0, 0), (0, 0), (0, F - l)))    # (B, ck, F)

    xo = jnp.fft.irfft(out_ft, n=N, axis=-1)                  # (B, ck, N) f32
    xo = xo.transpose(0, 2, 1).reshape(B, N, c, k)            # (B, N, c, k)

    return _normalize(xo)


# --------------------------- pure-JAX reference ----------------------------- #

def _reference(x, weights_r, weights_i, modes1):
    B, N, c, k = x.shape
    ck = c * k
    F = N // 2 + 1
    l = min(modes1, F)
    xv = x.reshape(B, N, ck).transpose(0, 2, 1)
    xf = jnp.fft.rfft(xv, axis=-1)
    w = (weights_r + 1j * weights_i)[:, :, :l]
    out = jnp.einsum('bix,iox->box', xf[:, :, :l], w)
    out_ft = jnp.zeros((B, ck, F), dtype=jnp.complex64).at[:, :, :l].set(out)
    xo = jnp.fft.irfft(out_ft, n=N, axis=-1)
    xo = xo.transpose(0, 2, 1).reshape(B, N, c, k)
    return (xo - jnp.mean(xo)) / jnp.std(xo, ddof=1)


# ----------------------------------- main ------------------------------------ #

if __name__ == "__main__":
    key = jax.random.PRNGKey(0)
    B, N, c, k = 2, 16, 1, 8          # input (B, N, c, k)
    alpha = 6                         # modes1; l = min(alpha, N//2+1) = 6
    ck = c * k
    scale = 1.0 / (c * k * c * k)

    k1, k2, k3 = jax.random.split(key, 3)
    x = jax.random.normal(k1, (B, N, c, k), dtype=jnp.float32)
    # weights1 = scale * rand(ck, ck, modes1, cfloat): uniform[0,1) re & im.
    weights_r = scale * jax.random.uniform(k2, (ck, ck, alpha), dtype=jnp.float32)
    weights_i = scale * jax.random.uniform(k3, (ck, ck, alpha), dtype=jnp.float32)

    # Hoisted / cached weight packing (done once, reused every forward).
    packed = pack_ft_weights(weights_r, weights_i, alpha, N)
    packed = jax.tree_util.tree_map(
        lambda t: jax.block_until_ready(t) if isinstance(t, jax.Array) else t,
        packed)

    out = sparse_kernel_ft1d(x, weights_r, weights_i, alpha, packed=packed)
    out = jax.block_until_ready(out)

    ref = _reference(x, weights_r, weights_i, alpha)
    assert out.shape == (B, N, c, k)
    assert jnp.allclose(out, ref, rtol=1e-3, atol=1e-3), "mismatch vs reference"

    print("KERNEL_OK")
</pallas_src>

<mosaic_0001>
module attributes {stable_mosaic.version = 11 : i64} {
  func.func @_mode_mix_kernel(%arg0: i32, %arg1: memref<1x2x128xf32, #tpu.memory_space<vmem>>, %arg2: memref<1x128x128xf32, #tpu.memory_space<vmem>>, %arg3: memref<1x2x128xf32, #tpu.memory_space<vmem>>) attributes {dimension_semantics = [#tpu.dimension_semantics<parallel>], iteration_bounds = array<i64: 1>, scalar_prefetch = 0 : i64, scratch_operands = 0 : i64, tpu.core_type = #tpu.core_type<tc>, window_params = [{transform_indices = @transform_0, window_bounds = array<i64: 1, 2, 128>}, {transform_indices = @transform_1, window_bounds = array<i64: 1, 128, 128>}, {transform_indices = @transform_2, window_bounds = array<i64: 1, 2, 128>}]} {
    %c0 = arith.constant 0 : index
    %c0_0 = arith.constant 0 : index
    %c0_1 = arith.constant 0 : index
    %0 = vector.load %arg1[%c0, %c0_0, %c0_1] : memref<1x2x128xf32, #tpu.memory_space<vmem>>, vector<1x2x128xf32>
    %c0_2 = arith.constant 0 : index
    %c0_3 = arith.constant 0 : index
    %c0_4 = arith.constant 0 : index
    %1 = vector.load %arg2[%c0_2, %c0_3, %c0_4] : memref<1x128x128xf32, #tpu.memory_space<vmem>>, vector<1x128x128xf32>
    "tpu.trace_start"() <{level = 10 : i32, message = "gbi,gio->gbo"}> : () -> ()
    %cst = arith.constant dense<0.000000e+00> : vector<1x2x128xf32>
    %2 = tpu.matmul %0, %1, %cst {dimension_numbers = #tpu.dot_dimension_numbers<[2], [1], [1], [2], [0, 0, 0, 1, 1, 2], [0], [0]>} : vector<1x2x128xf32>, vector<1x128x128xf32>, vector<1x2x128xf32> -> vector<1x2x128xf32>
    "tpu.trace_stop"() : () -> ()
    %c0_5 = arith.constant 0 : index
    %c0_6 = arith.constant 0 : index
    %c0_7 = arith.constant 0 : index
    %3 = vector.load %arg3[%c0_5, %c0_6, %c0_7] : memref<1x2x128xf32, #tpu.memory_space<vmem>>, vector<1x2x128xf32>
    tpu.vector_store %arg3[%c0_5, %c0_6, %c0_7], %2 {strides = array<i32>} : memref<1x2x128xf32, #tpu.memory_space<vmem>>, vector<1x2x128xf32>,
    return
  }
  func.func @transform_0(%arg0: i32) -> (i32, i32, i32) {
    %c0_i32 = arith.constant 0 : i32
    %c0_i32_0 = arith.constant 0 : i32
    %c0_i32_1 = arith.constant 0 : i32
    return %arg0, %c0_i32, %c0_i32_0 : i32, i32, i32
  }
  func.func @transform_1(%arg0: i32) -> (i32, i32, i32) {
    %c0_i32 = arith.constant 0 : i32
    %c0_i32_0 = arith.constant 0 : i32
    %c0_i32_1 = arith.constant 0 : i32
    return %arg0, %c0_i32, %c0_i32_0 : i32, i32, i32
  }
  func.func @transform_2(%arg0: i32) -> (i32, i32, i32) {
    %c0_i32 = arith.constant 0 : i32
    %c0_i32_0 = arith.constant 0 : i32
    %c0_i32_1 = arith.constant 0 : i32
    return %arg0, %c0_i32, %c0_i32_0 : i32, i32, i32
  }
}

</mosaic_0001>

<llo_original>
// kernel: tpu_custom_call.1
$region0: #{tpu_custom_call.1}
  #allocation0 [shape = 'u32[]', space=smem, size = 0x4, offset = 0x4, fixed_abs, tag = 'smem constant byte address 0x4 - core index']
  #allocation1 [shape = 'u32[144,128]{1,0:T(1,128)}', space=vmem, size = 0x12000, scoped, tag = 'internal scratch']
  %s0 = inlined_call_operand.hbm [shape: f32[1,2,128], index: 0, kind: input, shape index: {}]
  %s1 = inlined_call_operand.hbm [shape: f32[1,128,128], index: 1, kind: input, shape index: {}]
  %s2 = inlined_call_operand.hbm [shape: f32[1,2,128], index: 2, kind: output, shape index: {}]
  %s3 = sld [smem:[#allocation0]]
  $region26: #{tpu_custom_call.1} parent=0
    _
  %s5 = ssub.s32 1, %s3
  %s6 = scalar_select 0, %s5, %s3
  $region1: #{tpu_custom_call.1} parent=0
    #allocation2 [shape = 'u8[1024]{0}', space=vmem, size = 0x400, scoped, tag = 'input window, operand 0, single buffered']
    #allocation3 [shape = 's32[1]{0}', space=sflag, size = 0x4, scoped, tag = 'scoped memory for tpu_custom_call.1']
    #allocation4 [shape = 's32[1]{0}', space=sflag, size = 0x4, scoped, tag = 'scoped memory for tpu_custom_call.1']
    #allocation5 [shape = 'u8[65536]{0}', space=vmem, size = 0x10000, scoped, tag = 'input window, operand 1, single buffered']
    #allocation6 [shape = 's32[1]{0}', space=sflag, size = 0x4, scoped, tag = 'scoped memory for tpu_custom_call.1']
    #allocation7 [shape = 'u8[1024]{0}', space=vmem, size = 0x400, scoped, tag = 'output window, operand 0, single buffered']
    %7 = vsyncpa [#allocation3], 0
    %8 = vsyncpa [#allocation6], 0
    %9 = vsyncpa [#allocation4], 0
    // Predicated region
    $region2: #{tpu_custom_call.1} parent=1 // pred_check
      _
    $region3: #{tpu_custom_call.1} parent=1 // pred_check_branch
      %11 = sbr.rel (0) target = $region5
    $region4: #{tpu_custom_call.1} parent=1 // pred_region
      %s13 = ssub.s32 32, 32
      %14 = vsyncadd [#allocation3], %s13
      %s16 = sshll.u32 [#allocation2], 4
      %s17 = int_to_ptr.vmem [resolvable:$true] %s16
      %19 = dma.hbm_to_vmem [thread:$0]  %s0, 32, %s17, [#allocation3]
    $region5: #{tpu_custom_call.1} parent=1 // pred_fallthru
      _
    // Predicated region
    $region6: #{tpu_custom_call.1} parent=1 // pred_check
      _
    $region7: #{tpu_custom_call.1} parent=1 // pred_check_branch
      %21 = sbr.rel (0) target = $region9
    $region8: #{tpu_custom_call.1} parent=1 // pred_region
      %s23 = ssub.s32 2048, 2048
      %24 = vsyncadd [#allocation6], %s23
      %s25 = sshll.u32 [#allocation5], 4
      %s26 = int_to_ptr.vmem [resolvable:$true] %s25
      %31 = dma.hbm_to_vmem [thread:$0]  %s1, 2048, %s26, [#allocation6], 128, 128, 8
    $region9: #{tpu_custom_call.1} parent=1 // pred_fallthru
      _
    // Predicated region
    $region10: #{tpu_custom_call.1} parent=1 // pred_check
      _
    $region11: #{tpu_custom_call.1} parent=1 // pred_check_branch
      %33 = sbr.rel (0) target = $region13
    $region12: #{tpu_custom_call.1} parent=1 // pred_region
      %34 = dma.done [#allocation3], 32
    $region13: #{tpu_custom_call.1} parent=1 // pred_fallthru
      _
    // Predicated region
    $region14: #{tpu_custom_call.1} parent=1 // pred_check
      _
    $region15: #{tpu_custom_call.1} parent=1 // pred_check_branch
      %36 = sbr.rel (0) target = $region17
    $region16: #{tpu_custom_call.1} parent=1 // pred_region
      %37 = dma.done [#allocation6], 2048
    $region17: #{tpu_custom_call.1} parent=1 // pred_fallthru
      _
    %v38 = vld [vmem:[#allocation2] sm:$0x3]
    %v39 = vld [vmem:[#allocation5] sm:$0xff]
    %v40 = vld [vmem:[#allocation5 + $0x8] sm:$0xff]
    %v41 = vld [vmem:[#allocation5 + $0x10] sm:$0xff]
    %v42 = vld [vmem:[#allocation5 + $0x18] sm:$0xff]
    %v43 = vld [vmem:[#allocation5 + $0x20] sm:$0xff]
    %v44 = vld [vmem:[#allocation5 + $0x28] sm:$0xff]
    %v45 = vld [vmem:[#allocation5 + $0x30] sm:$0xff]
    %v46 = vld [vmem:[#allocation5 + $0x38] sm:$0xff]
    %v47 = vld [vmem:[#allocation5 + $0x40] sm:$0xff]
    %v48 = vld [vmem:[#allocation5 + $0x48] sm:$0xff]
    %v49 = vld [vmem:[#allocation5 + $0x50] sm:$0xff]
    %v50 = vld [vmem:[#allocation5 + $0x58] sm:$0xff]
    %v51 = vld [vmem:[#allocation5 + $0x60] sm:$0xff]
    %v52 = vld [vmem:[#allocation5 + $0x68] sm:$0xff]
    %v53 = vld [vmem:[#allocation5 + $0x70] sm:$0xff]
    %v54 = vld [vmem:[#allocation5 + $0x78] sm:$0xff]
    %55 = vmatprep.subr.mxu0 0.0
    %56 = vmatpush1.msra.mxu0 %v39
    %57 = vmatprep.subr.mxu0 0.0
    %58 = vmatpush1.msra.mxu0 %v40
    %59 = vmatprep.subr.mxu0 0.0
    %60 = vmatpush1.msra.mxu0 %v41
    %61 = vmatprep.subr.mxu0 0.0
    %62 = vmatpush1.msra.mxu0 %v42
    %63 = vmatprep.subr.mxu0 0.0
    %64 = vmatpush1.msra.mxu0 %v43
    %65 = vmatprep.subr.mxu0 0.0
    %66 = vmatpush1.msra.mxu0 %v44
    %67 = vmatprep.subr.mxu0 0.0
    %68 = vmatpush1.msra.mxu0 %v45
    %69 = vmatprep.subr.mxu0 0.0
    %70 = vmatpush1.msra.mxu0 %v46
    %71 = vmatprep.subr.mxu0 0.0
    %72 = vmatpush1.msra.mxu0 %v47
    %73 = vmatprep.subr.mxu0 0.0
    %74 = vmatpush1.msra.mxu0 %v48
    %75 = vmatprep.subr.mxu0 0.0
    %76 = vmatpush1.msra.mxu0 %v49
    %77 = vmatprep.subr.mxu0 0.0
    %78 = vmatpush1.msra.mxu0 %v50
    %79 = vmatprep.subr.mxu0 0.0
    %80 = vmatpush1.msra.mxu0 %v51
    %81 = vmatprep.subr.mxu0 0.0
    %82 = vmatpush1.msra.mxu0 %v52
    %83 = vmatprep.subr.mxu0 0.0
    %84 = vmatpush1.msra.mxu0 %v53
    %85 = vmatprep.subr.mxu0 0.0
    %86 = vmatpush1.msra.mxu0 %v54
    %87 = vmatprep.subr.mxu0 0.0
    %88 = vmatpush1.msra.mxu0 0.0
    %89 = vmatprep.subr.mxu0 0.0
    %90 = vmatpush1.msra.mxu0 0.0
    %91 = vmatprep.subr.mxu0 0.0
    %92 = vmatpush1.msra.mxu0 0.0
    %93 = vmatprep.subr.mxu0 0.0
    %94 = vmatpush1.msra.mxu0 0.0
    %95 = vmatprep.subr.mxu0 0.0
    %96 = vmatpush1.msra.mxu0 0.0
    %97 = vmatprep.subr.mxu0 0.0
    %98 = vmatpush1.msra.mxu0 0.0
    %99 = vmatprep.subr.mxu0 0.0
    %100 = vmatpush1.msra.mxu0 0.0
    %101 = vmatprep.subr.mxu0 0.0
    %102 = vmatpush1.msra.mxu0 0.0
    %103 = vmatprep.subr.mxu0 0.0
    %104 = vmatpush1.msra.mxu0 0.0
    %105 = vmatprep.subr.mxu0 0.0
    %106 = vmatpush1.msra.mxu0 0.0
    %107 = vmatprep.subr.mxu0 0.0
    %108 = vmatpush1.msra.mxu0 0.0
    %109 = vmatprep.subr.mxu0 0.0
    %110 = vmatpush1.msra.mxu0 0.0
    %111 = vmatprep.subr.mxu0 0.0
    %112 = vmatpush1.msra.mxu0 0.0
    %113 = vmatprep.subr.mxu0 0.0
    %114 = vmatpush1.msra.mxu0 0.0
    %115 = vmatprep.subr.mxu0 0.0
    %116 = vmatpush1.msra.mxu0 0.0
    %117 = vmatprep.subr.mxu0 0.0
    %118 = vmatpush1.msra.mxu0 0.0
    %119 = vmatprep.mubr.f32.mxu0 0.0
    %120 = vmatmul.mubr.f32.gmra.mrb[0].mxu0 %v38
    %v121 = vpop.f32.mrb[0].mxu0
    %v122 = vadd.f32 0.0, %v121
    %v123 = vpop.f32.mrb[0].mxu0
    %124 = vdwg.mxu0
    %125 = vst [vmem:[#allocation7] sm:$0x3] %v122
    // Predicated region
    $region18: #{tpu_custom_call.1} parent=1 // pred_check
      _
    $region19: #{tpu_custom_call.1} parent=1 // pred_check_branch
      %127 = sbr.rel (0) target = $region21
    $region20: #{tpu_custom_call.1} parent=1 // pred_region
      %s129 = ssub.s32 32, 32
      %130 = vsyncadd [#allocation4], %s129
      %s132 = sshll.u32 [#allocation7], 4
      %s133 = int_to_ptr.vmem [resolvable:$true] %s132
      %135 = dma.vmem_to_hbm [thread:$0]  %s133, 32, %s2, [#allocation4]
    $region21: #{tpu_custom_call.1} parent=1 // pred_fallthru
      _
    // Predicated region
    $region22: #{tpu_custom_call.1} parent=1 // pred_check
      _
    $region23: #{tpu_custom_call.1} parent=1 // pred_check_branch
      %137 = sbr.rel (0) target = $region25
    $region24: #{tpu_custom_call.1} parent=1 // pred_region
      %138 = dma.done [#allocation4], 32
    $region25: #{tpu_custom_call.1} parent=1 // pred_fallthru
      _
    %139 = vsyncpa [#allocation3], 1
    %140 = vsyncpa [#allocation6], 1
    %141 = vsyncpa [#allocation4], 1

</llo_original>
